<compile_context>
chip_gen: v7x
topology: tpu7x:2x2x1
jax: 0.10.0
libtpu: 0.0.40
codegen_flags: <defaults>
</compile_context>

<pallas_src>
import functools
import math

import jax
import jax.numpy as jnp
from jax.experimental import pallas as pl
from jax.experimental.pallas import tpu as pltpu

_BN_EPS = 1e-5
_LANE = 128
_SUBLANE = 8
# Force >= 2 batch tiles (v7x megacore sharding) once each half-tile is still
# a worthwhile amount of work.
_MIN_SPLIT_ROWS = 256


def _round_up(x, m):
    return ((x + m - 1) // m) * m


def _cdiv(a, b):
    return (a + b - 1) // b


# ----------------------------------------------------------------------------
# Single fused kernel: trunk -> fused (attack ⊕ risk) head stack
# ----------------------------------------------------------------------------
def _fused_forward_kernel(x_ref, *refs, compute_dtype):
    """refs = (w_0, b_0, w_1, b_1, ..., w_{L-1}, b_{L-1}, out_ref).

    Every layer is Linear(+folded BN)+ReLU except the last (fused output
    heads, no ReLU).  Matmuls accumulate in f32; bias-add/ReLU stay in f32
    (v5e VPU has no bf16 ALU), activations are cast back to compute_dtype for
    the next MXU pass.
    """
    out_ref = refs[-1]
    wb = refs[:-1]
    n_layers = len(wb) // 2

    h = x_ref[...].astype(compute_dtype)
    for i in range(n_layers):
        w = wb[2 * i][...]
        b = wb[2 * i + 1][...]                       # (1, N) f32
        y = jnp.dot(h, w, preferred_element_type=jnp.float32) + b
        if i < n_layers - 1:
            h = jnp.maximum(y, 0.0).astype(compute_dtype)
        else:
            out_ref[...] = y.astype(out_ref.dtype)


# ----------------------------------------------------------------------------
# Fold the 6 head layers into 3 block-diagonal layers + pad feature dims
# ----------------------------------------------------------------------------
def _build_fused_params(layers, n_trunk, n_attack, n_risk, compute_dtype):
    """Returns (fused [(w, b)] list, fin_pad).

    Weights are cast to compute_dtype; biases stay f32.
    """
    def place(k, n, blocks):
        m = jnp.zeros((k, n), jnp.float32)
        for r, c, w in blocks:
            m = m.at[r:r + w.shape[0], c:c + w.shape[1]].set(w)
        return m

    def place_bias(n, blocks):
        b = jnp.zeros((1, n), jnp.float32)
        for c, v in blocks:
            b = b.at[0, c:c + v.shape[0]].set(v)
        return b

    fused = []

    # ---- trunk (input feature dim only sublane-rounded, NOT 128-padded) ----
    w0, b0 = layers[0]
    fin, h0 = w0.shape
    fin_pad = _round_up(fin, _SUBLANE)
    h_pad = _round_up(h0, _LANE)
    fused.append((place(fin_pad, h_pad, [(0, 0, w0)]),
                  place_bias(h_pad, [(0, b0)])))
    prev_pad = h_pad
    for i in range(1, n_trunk):
        w, b = layers[i]
        out_pad = _round_up(w.shape[1], _LANE)
        fused.append((place(prev_pad, out_pad, [(0, 0, w)]),
                      place_bias(out_pad, [(0, b)])))
        prev_pad = out_pad

    # ---- heads: 6 matmuls fused into 3 block-diagonal matmuls ----
    a1w, a1b = layers[n_trunk + 0]     # (h_last, 128)
    a2w, a2b = layers[n_trunk + 1]     # (128, 64)
    ahw, ahb = layers[n_trunk + 2]     # (64, n_attack)
    r1w, r1b = layers[n_trunk + 3]     # (h_last, 64)
    r2w, r2b = layers[n_trunk + 4]     # (64, 32)
    rhw, rhb = layers[n_trunk + 5]     # (32, n_risk)

    A1, R1 = a1w.shape[1], r1w.shape[1]
    A2, R2 = a2w.shape[1], r2w.shape[1]
    assert n_attack + n_risk <= _LANE, (
        "fused logit layout requires n_attack + n_risk <= 128")
    # TODO(synk): if n_attack + n_risk ever exceeds 128, split the final fused
    # layer back into two output blocks.

    # Layer H1: [attack1 | risk1]   -> activation lanes [0:A1] / [A1:A1+R1]
    w1p = _round_up(A1 + R1, _LANE)
    fused.append((place(prev_pad, w1p, [(0, 0, a1w), (0, A1, r1w)]),
                  place_bias(w1p, [(0, a1b), (A1, r1b)])))

    # Layer H2: block-diag(attack2, risk2) -> lanes [0:A2] / [A2:A2+R2]
    w2p = _round_up(A2 + R2, _LANE)
    fused.append((place(w1p, w2p, [(0, 0, a2w), (A1, A2, r2w)]),
                  place_bias(w2p, [(0, a2b), (A2, r2b)])))

    # Layer H3: block-diag(attack_head, risk_head) -> lanes [0:nA] / [nA:nA+nR]
    w3p = _round_up(n_attack + n_risk, _LANE)
    fused.append((place(w2p, w3p, [(0, 0, ahw), (A2, n_attack, rhw)]),
                  place_bias(w3p, [(0, ahb), (n_attack, rhb)])))

    fused = [(w.astype(compute_dtype), b) for (w, b) in fused]
    return fused, fin_pad


# ----------------------------------------------------------------------------
# Forward wrapper
# ----------------------------------------------------------------------------
def enhanced_dual_nn_forward(x, layers, n_trunk, n_attack, n_risk, *,
                             batch_tile=1024, compute_dtype=jnp.float32):
    """Fused forward.  `layers` is the flat list of BN-folded (w, b) pairs."""
    B, fin = x.shape
    fused, fin_pad = _build_fused_params(
        layers, n_trunk, n_attack, n_risk, compute_dtype)
    out_pad = fused[-1][1].shape[1]

    # Batch tiling: sublane-round B first, derive TB from the tile count so a
    # batch just above a multiple of batch_tile does not double the work, and
    # keep >= 2 grid steps for large batches (v7x megacore).
    B8 = _round_up(B, _SUBLANE)
    n_tiles = _cdiv(B8, batch_tile)
    if n_tiles < 2 and B8 >= 2 * _MIN_SPLIT_ROWS:
        n_tiles = 2
    TB = _round_up(_cdiv(B8, n_tiles), _SUBLANE)
    B_pad = n_tiles * TB

    x = x.astype(compute_dtype)
    if (B_pad, fin_pad) != (B, fin):
        x = jnp.zeros((B_pad, fin_pad), compute_dtype).at[:B, :fin].set(x)

    flat_wb, wb_specs = [], []
    for w, b in fused:
        flat_wb += [w, b]
        # Constant index_map -> weights & biases stay VMEM-resident across the
        # whole batch grid (fetched once, never re-DMA'd).
        wb_specs += [pl.BlockSpec(w.shape, lambda i: (0, 0)),
                     pl.BlockSpec(b.shape, lambda i: (0, 0))]

    kernel = functools.partial(_fused_forward_kernel,
                               compute_dtype=compute_dtype)

    out = pl.pallas_call(
        kernel,
        out_shape=jax.ShapeDtypeStruct((B_pad, out_pad), jnp.float32),
        grid=(n_tiles,),
        in_specs=[pl.BlockSpec((TB, fin_pad), lambda i: (i, 0))] + wb_specs,
        out_specs=pl.BlockSpec((TB, out_pad), lambda i: (i, 0)),
        compiler_params=pltpu.CompilerParams(
            dimension_semantics=("parallel",),
            vmem_limit_bytes=48 * 1024 * 1024),
    )(x, *flat_wb)

    # Both heads live in disjoint lanes of the single output block.
    attack = out[:B, :n_attack]
    risk = out[:B, n_attack:n_attack + n_risk]
    return attack, risk


# ----------------------------------------------------------------------------
# Deterministic parameter construction (PyTorch-style Linear init; BN at its
# default initialization state, folded into the Linear).
# ----------------------------------------------------------------------------
def _linear_params(key, fan_in, fan_out):
    kw, kb = jax.random.split(key)
    bound = 1.0 / math.sqrt(fan_in)
    # stored as (in, out)  (transpose of PyTorch's (out, in))
    w = jax.random.uniform(kw, (fan_in, fan_out), jnp.float32, -bound, bound)
    b = jax.random.uniform(kb, (fan_out,), jnp.float32, -bound, bound)
    return w, b


def _fold_bn(w, b):
    fout = w.shape[1]
    gamma = jnp.ones((fout,), jnp.float32)
    beta = jnp.zeros((fout,), jnp.float32)
    mean = jnp.zeros((fout,), jnp.float32)
    var = jnp.ones((fout,), jnp.float32)
    scale = gamma / jnp.sqrt(var + _BN_EPS)
    shift = beta - mean * scale
    return w * scale[None, :], b * scale + shift


def init_enhanced_dual_nn(key, input_size, hidden_sizes,
                          num_classes_attack, num_classes_risk):
    """Returns (flat list of BN-folded (w, b) pairs, n_trunk)."""
    n_trunk = len(hidden_sizes)
    n_layers = n_trunk + 6
    keys = jax.random.split(key, n_layers)
    ki = iter(range(n_layers))
    layers = []

    # Trunk: input_layer(+bn), hidden_layers(+bn)
    dims = [input_size] + list(hidden_sizes)
    for i in range(n_trunk):
        w, b = _linear_params(keys[next(ki)], dims[i], dims[i + 1])
        layers.append(_fold_bn(w, b))

    # Attack branch: hidden[-1] -> 128 -> 64 -> num_classes_attack
    w, b = _linear_params(keys[next(ki)], hidden_sizes[-1], 128)
    layers.append(_fold_bn(w, b))
    w, b = _linear_params(keys[next(ki)], 128, 64)
    layers.append(_fold_bn(w, b))
    layers.append(_linear_params(keys[next(ki)], 64, num_classes_attack))

    # Risk branch: hidden[-1] -> 64 -> 32 -> num_classes_risk
    w, b = _linear_params(keys[next(ki)], hidden_sizes[-1], 64)
    layers.append(_fold_bn(w, b))
    w, b = _linear_params(keys[next(ki)], 64, 32)
    layers.append(_fold_bn(w, b))
    layers.append(_linear_params(keys[next(ki)], 32, num_classes_risk))

    return layers, n_trunk


# ----------------------------------------------------------------------------
# Pure-JAX reference (same folded params, UNFUSED layer structure) — checks
# the head fusion / padding / tiling end-to-end.
# ----------------------------------------------------------------------------
def _ref_forward(x, layers, n_trunk):
    def lay(h, idx, relu):
        w, b = layers[idx]
        y = h @ w + b
        return jnp.maximum(y, 0.0) if relu else y

    h = x
    for i in range(n_trunk):
        h = lay(h, i, True)
    a = lay(h, n_trunk + 0, True)
    a = lay(a, n_trunk + 1, True)
    attack = lay(a, n_trunk + 2, False)
    r = lay(h, n_trunk + 3, True)
    r = lay(r, n_trunk + 4, True)
    risk = lay(r, n_trunk + 5, False)
    return attack, risk


if __name__ == "__main__":
    key = jax.random.PRNGKey(0)
    k_params, k_x, k_x2 = jax.random.split(key, 3)

    batch = 8
    input_size = 32
    hidden_sizes = [64, 32]
    num_classes_attack = 5
    num_classes_risk = 3

    layers, n_trunk = init_enhanced_dual_nn(
        k_params, input_size, hidden_sizes, num_classes_attack, num_classes_risk
    )

    # --- small batch, f32 path ---
    x = jax.random.normal(k_x, (batch, input_size), jnp.float32)
    attack_out, risk_out = enhanced_dual_nn_forward(
        x, layers, n_trunk, num_classes_attack, num_classes_risk
    )
    jax.block_until_ready(attack_out)
    jax.block_until_ready(risk_out)

    assert attack_out.shape == (batch, num_classes_attack)
    assert risk_out.shape == (batch, num_classes_risk)

    ref_attack, ref_risk = _ref_forward(x, layers, n_trunk)
    assert jnp.allclose(attack_out, ref_attack, atol=1e-4, rtol=1e-4)
    assert jnp.allclose(risk_out, ref_risk, atol=1e-4, rtol=1e-4)

    # --- multi-tile batch with a ragged tail (exercises TB/B_pad logic) ---
    batch2 = 300
    x2 = jax.random.normal(k_x2, (batch2, input_size), jnp.float32)
    a2, r2 = enhanced_dual_nn_forward(
        x2, layers, n_trunk, num_classes_attack, num_classes_risk,
        batch_tile=128)
    jax.block_until_ready(a2)
    ref_a2, ref_r2 = _ref_forward(x2, layers, n_trunk)
    assert a2.shape == (batch2, num_classes_attack)
    assert r2.shape == (batch2, num_classes_risk)
    assert jnp.allclose(a2, ref_a2, atol=1e-4, rtol=1e-4)
    assert jnp.allclose(r2, ref_r2, atol=1e-4, rtol=1e-4)

    # --- bf16-input / f32-accumulate throughput path (looser tolerance) ---
    a3, r3 = enhanced_dual_nn_forward(
        x2, layers, n_trunk, num_classes_attack, num_classes_risk,
        batch_tile=128, compute_dtype=jnp.bfloat16)
    jax.block_until_ready(a3)
    assert jnp.allclose(a3, ref_a2, atol=5e-2, rtol=5e-2)
    assert jnp.allclose(r3, ref_r2, atol=5e-2, rtol=5e-2)

    print("KERNEL_OK")
</pallas_src>

<mosaic_0001>
module attributes {stable_mosaic.version = 11 : i64} {
  func.func @_fused_forward_kernel(%arg0: i32, %arg1: memref<8x32xf32, #tpu.memory_space<vmem>>, %arg2: memref<32x128xf32, #tpu.memory_space<vmem>>, %arg3: memref<1x128xf32, #tpu.memory_space<vmem>>, %arg4: memref<128x128xf32, #tpu.memory_space<vmem>>, %arg5: memref<1x128xf32, #tpu.memory_space<vmem>>, %arg6: memref<128x256xf32, #tpu.memory_space<vmem>>, %arg7: memref<1x256xf32, #tpu.memory_space<vmem>>, %arg8: memref<256x128xf32, #tpu.memory_space<vmem>>, %arg9: memref<1x128xf32, #tpu.memory_space<vmem>>, %arg10: memref<128x128xf32, #tpu.memory_space<vmem>>, %arg11: memref<1x128xf32, #tpu.memory_space<vmem>>, %arg12: memref<8x128xf32, #tpu.memory_space<vmem>>) attributes {dimension_semantics = [#tpu.dimension_semantics<parallel>], iteration_bounds = array<i64: 1>, scalar_prefetch = 0 : i64, scratch_operands = 0 : i64, tpu.core_type = #tpu.core_type<tc>, window_params = [{transform_indices = @transform_0, window_bounds = array<i64: 8, 32>}, {pipeline_mode = #tpu.pipeline_mode<synchronous>, transform_indices = @transform_1, window_bounds = array<i64: 32, 128>}, {pipeline_mode = #tpu.pipeline_mode<synchronous>, transform_indices = @transform_2, window_bounds = array<i64: 1, 128>}, {pipeline_mode = #tpu.pipeline_mode<synchronous>, transform_indices = @transform_3, window_bounds = array<i64: 128, 128>}, {pipeline_mode = #tpu.pipeline_mode<synchronous>, transform_indices = @transform_4, window_bounds = array<i64: 1, 128>}, {pipeline_mode = #tpu.pipeline_mode<synchronous>, transform_indices = @transform_5, window_bounds = array<i64: 128, 256>}, {pipeline_mode = #tpu.pipeline_mode<synchronous>, transform_indices = @transform_6, window_bounds = array<i64: 1, 256>}, {pipeline_mode = #tpu.pipeline_mode<synchronous>, transform_indices = @transform_7, window_bounds = array<i64: 256, 128>}, {pipeline_mode = #tpu.pipeline_mode<synchronous>, transform_indices = @transform_8, window_bounds = array<i64: 1, 128>}, {pipeline_mode = #tpu.pipeline_mode<synchronous>, transform_indices = @transform_9, window_bounds = array<i64: 128, 128>}, {pipeline_mode = #tpu.pipeline_mode<synchronous>, transform_indices = @transform_10, window_bounds = array<i64: 1, 128>}, {transform_indices = @transform_11, window_bounds = array<i64: 8, 128>}]} {
    %c0 = arith.constant 0 : index
    %c0_0 = arith.constant 0 : index
    %0 = vector.load %arg1[%c0, %c0_0] : memref<8x32xf32, #tpu.memory_space<vmem>>, vector<8x32xf32>
    %c0_1 = arith.constant 0 : index
    %c0_2 = arith.constant 0 : index
    %1 = vector.load %arg2[%c0_1, %c0_2] : memref<32x128xf32, #tpu.memory_space<vmem>>, vector<32x128xf32>
    %c0_3 = arith.constant 0 : index
    %c0_4 = arith.constant 0 : index
    %2 = vector.load %arg3[%c0_3, %c0_4] : memref<1x128xf32, #tpu.memory_space<vmem>>, vector<1x128xf32>
    %cst = arith.constant dense<0.000000e+00> : vector<8x128xf32>
    %3 = tpu.matmul %0, %1, %cst {dimension_numbers = #tpu.dot_dimension_numbers<[1], [0], [0], [1], [0, 0, 1, 1], [], []>} : vector<8x32xf32>, vector<32x128xf32>, vector<8x128xf32> -> vector<8x128xf32>
    %4 = vector.broadcast %2 : vector<1x128xf32> to vector<8x128xf32>
    %5 = arith.addf %3, %4 : vector<8x128xf32>
    %cst_5 = arith.constant 0.000000e+00 : f32
    %6 = vector.broadcast %cst_5 : f32 to vector<8x128xf32>
    %7 = arith.maximumf %5, %6 : vector<8x128xf32>
    %c0_6 = arith.constant 0 : index
    %c0_7 = arith.constant 0 : index
    %8 = vector.load %arg4[%c0_6, %c0_7] : memref<128x128xf32, #tpu.memory_space<vmem>>, vector<128x128xf32>
    %c0_8 = arith.constant 0 : index
    %c0_9 = arith.constant 0 : index
    %9 = vector.load %arg5[%c0_8, %c0_9] : memref<1x128xf32, #tpu.memory_space<vmem>>, vector<1x128xf32>
    %cst_10 = arith.constant dense<0.000000e+00> : vector<8x128xf32>
    %10 = tpu.matmul %7, %8, %cst_10 {dimension_numbers = #tpu.dot_dimension_numbers<[1], [0], [0], [1], [0, 0, 1, 1], [], []>} : vector<8x128xf32>, vector<128x128xf32>, vector<8x128xf32> -> vector<8x128xf32>
    %11 = vector.broadcast %9 : vector<1x128xf32> to vector<8x128xf32>
    %12 = arith.addf %10, %11 : vector<8x128xf32>
    %cst_11 = arith.constant 0.000000e+00 : f32
    %13 = vector.broadcast %cst_11 : f32 to vector<8x128xf32>
    %14 = arith.maximumf %12, %13 : vector<8x128xf32>
    %c0_12 = arith.constant 0 : index
    %c0_13 = arith.constant 0 : index
    %15 = vector.load %arg6[%c0_12, %c0_13] : memref<128x256xf32, #tpu.memory_space<vmem>>, vector<128x256xf32>
    %c0_14 = arith.constant 0 : index
    %c0_15 = arith.constant 0 : index
    %16 = vector.load %arg7[%c0_14, %c0_15] : memref<1x256xf32, #tpu.memory_space<vmem>>, vector<1x256xf32>
    %cst_16 = arith.constant dense<0.000000e+00> : vector<8x256xf32>
    %17 = tpu.matmul %14, %15, %cst_16 {dimension_numbers = #tpu.dot_dimension_numbers<[1], [0], [0], [1], [0, 0, 1, 1], [], []>} : vector<8x128xf32>, vector<128x256xf32>, vector<8x256xf32> -> vector<8x256xf32>
    %18 = vector.broadcast %16 : vector<1x256xf32> to vector<8x256xf32>
    %19 = arith.addf %17, %18 : vector<8x256xf32>
    %cst_17 = arith.constant 0.000000e+00 : f32
    %20 = vector.broadcast %cst_17 : f32 to vector<8x256xf32>
    %21 = arith.maximumf %19, %20 : vector<8x256xf32>
    %c0_18 = arith.constant 0 : index
    %c0_19 = arith.constant 0 : index
    %22 = vector.load %arg8[%c0_18, %c0_19] : memref<256x128xf32, #tpu.memory_space<vmem>>, vector<256x128xf32>
    %c0_20 = arith.constant 0 : index
    %c0_21 = arith.constant 0 : index
    %23 = vector.load %arg9[%c0_20, %c0_21] : memref<1x128xf32, #tpu.memory_space<vmem>>, vector<1x128xf32>
    %cst_22 = arith.constant dense<0.000000e+00> : vector<8x128xf32>
    %24 = tpu.matmul %21, %22, %cst_22 {dimension_numbers = #tpu.dot_dimension_numbers<[1], [0], [0], [1], [0, 0, 1, 1], [], []>} : vector<8x256xf32>, vector<256x128xf32>, vector<8x128xf32> -> vector<8x128xf32>
    %25 = vector.broadcast %23 : vector<1x128xf32> to vector<8x128xf32>
    %26 = arith.addf %24, %25 : vector<8x128xf32>
    %cst_23 = arith.constant 0.000000e+00 : f32
    %27 = vector.broadcast %cst_23 : f32 to vector<8x128xf32>
    %28 = arith.maximumf %26, %27 : vector<8x128xf32>
    %c0_24 = arith.constant 0 : index
    %c0_25 = arith.constant 0 : index
    %29 = vector.load %arg10[%c0_24, %c0_25] : memref<128x128xf32, #tpu.memory_space<vmem>>, vector<128x128xf32>
    %c0_26 = arith.constant 0 : index
    %c0_27 = arith.constant 0 : index
    %30 = vector.load %arg11[%c0_26, %c0_27] : memref<1x128xf32, #tpu.memory_space<vmem>>, vector<1x128xf32>
    %cst_28 = arith.constant dense<0.000000e+00> : vector<8x128xf32>
    %31 = tpu.matmul %28, %29, %cst_28 {dimension_numbers = #tpu.dot_dimension_numbers<[1], [0], [0], [1], [0, 0, 1, 1], [], []>} : vector<8x128xf32>, vector<128x128xf32>, vector<8x128xf32> -> vector<8x128xf32>
    %32 = vector.broadcast %30 : vector<1x128xf32> to vector<8x128xf32>
    %33 = arith.addf %31, %32 : vector<8x128xf32>
    %c0_29 = arith.constant 0 : index
    %c0_30 = arith.constant 0 : index
    %34 = vector.load %arg12[%c0_29, %c0_30] : memref<8x128xf32, #tpu.memory_space<vmem>>, vector<8x128xf32>
    tpu.vector_store %arg12[%c0_29, %c0_30], %33 {strides = array<i32>} : memref<8x128xf32, #tpu.memory_space<vmem>>, vector<8x128xf32>,
    return
  }
  func.func @transform_0(%arg0: i32) -> (i32, i32) {
    %c0_i32 = arith.constant 0 : i32
    %c0_i32_0 = arith.constant 0 : i32
    return %arg0, %c0_i32 : i32, i32
  }
  func.func @transform_1(%arg0: i32) -> (i32, i32) {
    %c0_i32 = arith.constant 0 : i32
    %c0_i32_0 = arith.constant 0 : i32
    %c0_i32_1 = arith.constant 0 : i32
    return %c0_i32, %c0_i32_0 : i32, i32
  }
  func.func @transform_2(%arg0: i32) -> (i32, i32) {
    %c0_i32 = arith.constant 0 : i32
    %c0_i32_0 = arith.constant 0 : i32
    %c0_i32_1 = arith.constant 0 : i32
    return %c0_i32, %c0_i32_0 : i32, i32
  }
  func.func @transform_3(%arg0: i32) -> (i32, i32) {
    %c0_i32 = arith.constant 0 : i32
    %c0_i32_0 = arith.constant 0 : i32
    %c0_i32_1 = arith.constant 0 : i32
    return %c0_i32, %c0_i32_0 : i32, i32
  }
  func.func @transform_4(%arg0: i32) -> (i32, i32) {
    %c0_i32 = arith.constant 0 : i32
    %c0_i32_0 = arith.constant 0 : i32
    %c0_i32_1 = arith.constant 0 : i32
    return %c0_i32, %c0_i32_0 : i32, i32
  }
  func.func @transform_5(%arg0: i32) -> (i32, i32) {
    %c0_i32 = arith.constant 0 : i32
    %c0_i32_0 = arith.constant 0 : i32
    %c0_i32_1 = arith.constant 0 : i32
    return %c0_i32, %c0_i32_0 : i32, i32
  }
  func.func @transform_6(%arg0: i32) -> (i32, i32) {
    %c0_i32 = arith.constant 0 : i32
    %c0_i32_0 = arith.constant 0 : i32
    %c0_i32_1 = arith.constant 0 : i32
    return %c0_i32, %c0_i32_0 : i32, i32
  }
  func.func @transform_7(%arg0: i32) -> (i32, i32) {
    %c0_i32 = arith.constant 0 : i32
    %c0_i32_0 = arith.constant 0 : i32
    %c0_i32_1 = arith.constant 0 : i32
    return %c0_i32, %c0_i32_0 : i32, i32
  }
  func.func @transform_8(%arg0: i32) -> (i32, i32) {
    %c0_i32 = arith.constant 0 : i32
    %c0_i32_0 = arith.constant 0 : i32
    %c0_i32_1 = arith.constant 0 : i32
    return %c0_i32, %c0_i32_0 : i32, i32
  }
  func.func @transform_9(%arg0: i32) -> (i32, i32) {
    %c0_i32 = arith.constant 0 : i32
    %c0_i32_0 = arith.constant 0 : i32
    %c0_i32_1 = arith.constant 0 : i32
    return %c0_i32, %c0_i32_0 : i32, i32
  }
  func.func @transform_10(%arg0: i32) -> (i32, i32) {
    %c0_i32 = arith.constant 0 : i32
    %c0_i32_0 = arith.constant 0 : i32
    %c0_i32_1 = arith.constant 0 : i32
    return %c0_i32, %c0_i32_0 : i32, i32
  }
  func.func @transform_11(%arg0: i32) -> (i32, i32) {
    %c0_i32 = arith.constant 0 : i32
    %c0_i32_0 = arith.constant 0 : i32
    return %arg0, %c0_i32 : i32, i32
  }
}

</mosaic_0001>

<llo_original>
// kernel: tpu_custom_call.1
$region0: #{tpu_custom_call.1}
  #allocation0 [shape = 'u32[]', space=smem, size = 0x4, offset = 0x4, fixed_abs, tag = 'smem constant byte address 0x4 - core index']
  #allocation1 [shape = 'u32[144,128]{1,0:T(1,128)}', space=vmem, size = 0x12000, scoped, tag = 'internal scratch']
  %s0 = inlined_call_operand.hbm [shape: f32[8,32], index: 0, kind: input, shape index: {}]
  %s1 = inlined_call_operand.hbm [shape: f32[32,128], index: 1, kind: input, shape index: {}]
  %s2 = inlined_call_operand.vmem [shape: f32[1,128], index: 2, kind: input, shape index: {}]
  %s3 = inlined_call_operand.hbm [shape: f32[128,128], index: 3, kind: input, shape index: {}]
  %s4 = inlined_call_operand.vmem [shape: f32[1,128], index: 4, kind: input, shape index: {}]
  %s5 = inlined_call_operand.hbm [shape: f32[128,256], index: 5, kind: input, shape index: {}]
  %s6 = inlined_call_operand.vmem [shape: f32[1,256], index: 6, kind: input, shape index: {}]
  %s7 = inlined_call_operand.hbm [shape: f32[256,128], index: 7, kind: input, shape index: {}]
  %s8 = inlined_call_operand.vmem [shape: f32[1,128], index: 8, kind: input, shape index: {}]
  %s9 = inlined_call_operand.hbm [shape: f32[128,128], index: 9, kind: input, shape index: {}]
  %s10 = inlined_call_operand.vmem [shape: f32[1,128], index: 10, kind: input, shape index: {}]
  %s11 = inlined_call_operand.hbm [shape: f32[8,128], index: 11, kind: output, shape index: {}]
  %s12 = sld [smem:[#allocation0]]
  $region78: #{tpu_custom_call.1} parent=0
    _
  %s14 = ssub.s32 1, %s12
  %s15 = scalar_select 0, %s14, %s12
  $region1: #{tpu_custom_call.1} parent=0
    #allocation2 [shape = 'u8[4096]{0}', space=vmem, size = 0x1000, scoped, tag = 'input window, operand 0, single buffered']
    #allocation3 [shape = 's32[1]{0}', space=sflag, size = 0x4, scoped, tag = 'scoped memory for tpu_custom_call.1']
    #allocation4 [shape = 's32[1]{0}', space=sflag, size = 0x4, scoped, tag = 'scoped memory for tpu_custom_call.1']
    #allocation5 [shape = 'u8[16384]{0}', space=vmem, size = 0x4000, scoped, tag = 'input window, operand 1, single buffered']
    #allocation6 [shape = 's32[1]{0}', space=sflag, size = 0x4, scoped, tag = 'scoped memory for tpu_custom_call.1']
    #allocation7 [shape = 'u8[65536]{0}', space=vmem, size = 0x10000, scoped, tag = 'input window, operand 3, single buffered']
    #allocation8 [shape = 'u8[131072]{0}', space=vmem, size = 0x20000, scoped, tag = 'input window, operand 5, single buffered']
    #allocation9 [shape = 's32[1]{0}', space=sflag, size = 0x4, scoped, tag = 'scoped memory for tpu_custom_call.1']
    #allocation10 [shape = 'u8[131072]{0}', space=vmem, size = 0x20000, scoped, tag = 'input window, operand 7, single buffered']
    #allocation11 [shape = 'u8[65536]{0}', space=vmem, size = 0x10000, scoped, tag = 'input window, operand 9, single buffered']
    #allocation12 [shape = 's32[1]{0}', space=sflag, size = 0x4, scoped, tag = 'scoped memory for tpu_custom_call.1']
    #allocation13 [shape = 'u8[4096]{0}', space=vmem, size = 0x1000, scoped, tag = 'output window, operand 0, single buffered']
    %16 = vsyncpa [#allocation3], 0
    %17 = vsyncpa [#allocation6], 0
    %18 = vsyncpa [#allocation9], 0
    %19 = vsyncpa [#allocation12], 0
    %20 = vsyncpa [#allocation4], 0
    // Predicated region
    $region2: #{tpu_custom_call.1} parent=1 // pred_check
      _
    $region3: #{tpu_custom_call.1} parent=1 // pred_check_branch
      %22 = sbr.rel (0) target = $region5
    $region4: #{tpu_custom_call.1} parent=1 // pred_region
      %s24 = ssub.s32 128, 128
      %25 = vsyncadd [#allocation3], %s24
      %s27 = sshll.u32 [#allocation2], 4
      %s28 = int_to_ptr.vmem [resolvable:$true] %s27
      %30 = dma.hbm_to_vmem [thread:$0]  %s0, 128, %s28, [#allocation3]
    $region5: #{tpu_custom_call.1} parent=1 // pred_fallthru
      _
    // Predicated region
    $region6: #{tpu_custom_call.1} parent=1 // pred_check
      _
    $region7: #{tpu_custom_call.1} parent=1 // pred_check_branch
      %32 = sbr.rel (0) target = $region9
    $region8: #{tpu_custom_call.1} parent=1 // pred_region
      %s34 = ssub.s32 512, 512
      %35 = vsyncadd [#allocation6], %s34
      %s36 = sshll.u32 [#allocation5], 4
      %s37 = int_to_ptr.vmem [resolvable:$true] %s36
      %42 = dma.hbm_to_vmem [thread:$0]  %s1, 512, %s37, [#allocation6], 128, 128, 8
    $region9: #{tpu_custom_call.1} parent=1 // pred_fallthru
      _
    // Predicated region
    $region10: #{tpu_custom_call.1} parent=1 // pred_check
      _
    $region11: #{tpu_custom_call.1} parent=1 // pred_check_branch
      %44 = sbr.rel (0) target = $region13
    $region12: #{tpu_custom_call.1} parent=1 // pred_region
      _
    $region13: #{tpu_custom_call.1} parent=1 // pred_fallthru
      _
    // Predicated region
    $region14: #{tpu_custom_call.1} parent=1 // pred_check
      _
    $region15: #{tpu_custom_call.1} parent=1 // pred_check_branch
      %46 = sbr.rel (0) target = $region17
    $region16: #{tpu_custom_call.1} parent=1 // pred_region
      %s48 = ssub.s32 2048, 2048
      %49 = vsyncadd [#allocation6], %s48
      %s50 = sshll.u32 [#allocation7], 4
      %s51 = int_to_ptr.vmem [resolvable:$true] %s50
      %56 = dma.hbm_to_vmem [thread:$0]  %s3, 2048, %s51, [#allocation6], 128, 128, 8
    $region17: #{tpu_custom_call.1} parent=1 // pred_fallthru
      _
    // Predicated region
    $region18: #{tpu_custom_call.1} parent=1 // pred_check
      _
    $region19: #{tpu_custom_call.1} parent=1 // pred_check_branch
      %58 = sbr.rel (0) target = $region21
    $region20: #{tpu_custom_call.1} parent=1 // pred_region
      _
    $region21: #{tpu_custom_call.1} parent=1 // pred_fallthru
      _
    // Predicated region
    $region22: #{tpu_custom_call.1} parent=1 // pred_check
      _
    $region23: #{tpu_custom_call.1} parent=1 // pred_check_branch
      %60 = sbr.rel (0) target = $region25
    $region24: #{tpu_custom_call.1} parent=1 // pred_region
      %s62 = ssub.s32 4096, 4096
      %63 = vsyncadd [#allocation9], %s62
      %s64 = sshll.u32 [#allocation8], 4
      %s65 = int_to_ptr.vmem [resolvable:$true] %s64
      %70 = dma.hbm_to_vmem [thread:$0]  %s5, 4096, %s65, [#allocation9], 256, 256, 16
    $region25: #{tpu_custom_call.1} parent=1 // pred_fallthru
      _
    // Predicated region
    $region26: #{tpu_custom_call.1} parent=1 // pred_check
      _
    $region27: #{tpu_custom_call.1} parent=1 // pred_check_branch
      %72 = sbr.rel (0) target = $region29
    $region28: #{tpu_custom_call.1} parent=1 // pred_region
      _
    $region29: #{tpu_custom_call.1} parent=1 // pred_fallthru
      _
    // Predicated region
    $region30: #{tpu_custom_call.1} parent=1 // pred_check
      _
    $region31: #{tpu_custom_call.1} parent=1 // pred_check_branch
      %74 = sbr.rel (0) target = $region33
    $region32: #{tpu_custom_call.1} parent=1 // pred_region
      %s76 = ssub.s32 4096, 4096
      %77 = vsyncadd [#allocation9], %s76
      %s78 = sshll.u32 [#allocation10], 4
      %s79 = int_to_ptr.vmem [resolvable:$true] %s78
      %84 = dma.hbm_to_vmem [thread:$0]  %s7, 4096, %s79, [#allocation9], 128, 128, 8
    $region33: #{tpu_custom_call.1} parent=1 // pred_fallthru
      _
    // Predicated region
    $region34: #{tpu_custom_call.1} parent=1 // pred_check
      _
    $region35: #{tpu_custom_call.1} parent=1 // pred_check_branch
      %86 = sbr.rel (0) target = $region37
    $region36: #{tpu_custom_call.1} parent=1 // pred_region
      _
    $region37: #{tpu_custom_call.1} parent=1 // pred_fallthru
      _
    // Predicated region
    $region38: #{tpu_custom_call.1} parent=1 // pred_check
      _
    $region39: #{tpu_custom_call.1} parent=1 // pred_check_branch
      %88 = sbr.rel (0) target = $region41
    $region40: #{tpu_custom_call.1} parent=1 // pred_region
      %s90 = ssub.s32 2048, 2048
      %91 = vsyncadd [#allocation12], %s90
      %s92 = sshll.u32 [#allocation11], 4
      %s93 = int_to_ptr.vmem [resolvable:$true] %s92
      %98 = dma.hbm_to_vmem [thread:$0]  %s9, 2048, %s93, [#allocation12], 128, 128, 8
    $region41: #{tpu_custom_call.1} parent=1 // pred_fallthru
      _
    // Predicated region
    $region42: #{tpu_custom_call.1} parent=1 // pred_check
      _
    $region43: #{tpu_custom_call.1} parent=1 // pred_check_branch
      %100 = sbr.rel (0) target = $region45
    $region44: #{tpu_custom_call.1} parent=1 // pred_region
      _
    $region45: #{tpu_custom_call.1} parent=1 // pred_fallthru
      _
    // Predicated region
    $region46: #{tpu_custom_call.1} parent=1 // pred_check
      _
    $region47: #{tpu_custom_call.1} parent=1 // pred_check_branch
      %102 = sbr.rel (0) target = $region49
    $region48: #{tpu_custom_call.1} parent=1 // pred_region
      %103 = dma.done [#allocation3], 128
    $region49: #{tpu_custom_call.1} parent=1 // pred_fallthru
      _
    // Predicated region
    $region50: #{tpu_custom_call.1} parent=1 // pred_check
      _
    $region51: #{tpu_custom_call.1} parent=1 // pred_check_branch
      %105 = sbr.rel (0) target = $region53
    $region52: #{tpu_custom_call.1} parent=1 // pred_region
      %106 = dma.done [#allocation6], 512
    $region53: #{tpu_custom_call.1} parent=1 // pred_fallthru
      _
    // Predicated region
    $region54: #{tpu_custom_call.1} parent=1 // pred_check
      _
    $region55: #{tpu_custom_call.1} parent=1 // pred_check_branch
      %108 = sbr.rel (0) target = $region57
    $region56: #{tpu_custom_call.1} parent=1 // pred_region
      %109 = dma.done [#allocation6], 2048
    $region57: #{tpu_custom_call.1} parent=1 // pred_fallthru
      _
    // Predicated region
    $region58: #{tpu_custom_call.1} parent=1 // pred_check
      _
    $region59: #{tpu_custom_call.1} parent=1 // pred_check_branch
      %111 = sbr.rel (0) target = $region61
    $region60: #{tpu_custom_call.1} parent=1 // pred_region
      %112 = dma.done [#allocation9], 4096
    $region61: #{tpu_custom_call.1} parent=1 // pred_fallthru
      _
    // Predicated region
    $region62: #{tpu_custom_call.1} parent=1 // pred_check
      _
    $region63: #{tpu_custom_call.1} parent=1 // pred_check_branch
      %114 = sbr.rel (0) target = $region65
    $region64: #{tpu_custom_call.1} parent=1 // pred_region
      %115 = dma.done [#allocation9], 4096
    $region65: #{tpu_custom_call.1} parent=1 // pred_fallthru
      _
    // Predicated region
    $region66: #{tpu_custom_call.1} parent=1 // pred_check
      _
    $region67: #{tpu_custom_call.1} parent=1 // pred_check_branch
      %117 = sbr.rel (0) target = $region69
    $region68: #{tpu_custom_call.1} parent=1 // pred_region
      %118 = dma.done [#allocation12], 2048
    $region69: #{tpu_custom_call.1} parent=1 // pred_fallthru
      _
    %v119 = vld [vmem:[#allocation2] sm:$0xff]
    %v120 = vld [vmem:[#allocation5] sm:$0xff]
    %v121 = vld [vmem:[#allocation5 + $0x8] sm:$0xff]
    %v122 = vld [vmem:[#allocation5 + $0x10] sm:$0xff]
    %v123 = vld [vmem:[#allocation5 + $0x18] sm:$0xff]
    %v124 = vld [vmem:[%s2] sm:$0x1]
    %v126 = vlaneseq
    %v127 = vshrl.u32 %v126, 7
    %v128 = vsub.s32 0, %v127
    %v129 = vrot.slane %v124, %v128
    %vm131 = vcmask 261120
    %v133 = vsel %vm131, %v119, 0
    %135 = vmatprep.subr.mxu0 0.0
    %136 = vmatpush1.msra.mxu0 %v120
    %137 = vmatprep.subr.mxu0 0.0
    %138 = vmatpush1.msra.mxu0 %v121
    %139 = vmatprep.subr.mxu0 0.0
    %140 = vmatpush1.msra.mxu0 %v122
    %141 = vmatprep.subr.mxu0 0.0
    %142 = vmatpush1.msra.mxu0 %v123
    %143 = vmatprep.subr.mxu0 0.0
    %144 = vmatpush1.msra.mxu0 0.0
    %145 = vmatprep.subr.mxu0 0.0
    %146 = vmatpush1.msra.mxu0 0.0
    %147 = vmatprep.subr.mxu0 0.0
    %148 = vmatpush1.msra.mxu0 0.0
    %149 = vmatprep.subr.mxu0 0.0
    %150 = vmatpush1.msra.mxu0 0.0
    %151 = vmatprep.subr.mxu0 0.0
    %152 = vmatpush1.msra.mxu0 0.0
    %153 = vmatprep.subr.mxu0 0.0
    %154 = vmatpush1.msra.mxu0 0.0
    %155 = vmatprep.subr.mxu0 0.0
    %156 = vmatpush1.msra.mxu0 0.0
    %157 = vmatprep.subr.mxu0 0.0
    %158 = vmatpush1.msra.mxu0 0.0
    %159 = vmatprep.subr.mxu0 0.0
    %160 = vmatpush1.msra.mxu0 0.0
    %161 = vmatprep.subr.mxu0 0.0
    %162 = vmatpush1.msra.mxu0 0.0
    %163 = vmatprep.subr.mxu0 0.0
    %164 = vmatpush1.msra.mxu0 0.0
    %165 = vmatprep.subr.mxu0 0.0
    %166 = vmatpush1.msra.mxu0 0.0
    %167 = vmatprep.subr.mxu0 0.0
    %168 = vmatpush1.msra.mxu0 0.0
    %169 = vmatprep.subr.mxu0 0.0
    %170 = vmatpush1.msra.mxu0 0.0
    %171 = vmatprep.subr.mxu0 0.0
    %172 = vmatpush1.msra.mxu0 0.0
    %173 = vmatprep.subr.mxu0 0.0
    %174 = vmatpush1.msra.mxu0 0.0
    %175 = vmatprep.subr.mxu0 0.0
    %176 = vmatpush1.msra.mxu0 0.0
    %177 = vmatprep.subr.mxu0 0.0
    %178 = vmatpush1.msra.mxu0 0.0
    %179 = vmatprep.subr.mxu0 0.0
    %180 = vmatpush1.msra.mxu0 0.0
    %181 = vmatprep.subr.mxu0 0.0
    %182 = vmatpush1.msra.mxu0 0.0
    %183 = vmatprep.subr.mxu0 0.0
    %184 = vmatpush1.msra.mxu0 0.0
    %185 = vmatprep.subr.mxu0 0.0
    %186 = vmatpush1.msra.mxu0 0.0
    %187 = vmatprep.subr.mxu0 0.0
    %188 = vmatpush1.msra.mxu0 0.0
    %189 = vmatprep.subr.mxu0 0.0
    %190 = vmatpush1.msra.mxu0 0.0
    %191 = vmatprep.subr.mxu0 0.0
    %192 = vmatpush1.msra.mxu0 0.0
    %193 = vmatprep.subr.mxu0 0.0
    %194 = vmatpush1.msra.mxu0 0.0
    %195 = vmatprep.subr.mxu0 0.0
    %196 = vmatpush1.msra.mxu0 0.0
    %197 = vmatprep.subr.mxu0 0.0
    %198 = vmatpush1.msra.mxu0 0.0
    %199 = vmatprep.mubr.f32.mxu0 0.0
    %200 = vmatmul.mubr.f32.gmra.mrb[0].mxu0 %v133
    %v201 = vpop.f32.mrb[0].mxu0
    %v202 = vadd.f32 %v129, %v201
    %v203 = vpop.f32.mrb[0].mxu0
    %204 = vdwg.mxu0
    %v205 = vmax.f32 %v202, 0.0
    %v206 = vld [vmem:[#allocation7] sm:$0xff]
    %v207 = vld [vmem:[#allocation7 + $0x8] sm:$0xff]
    %v208 = vld [vmem:[#allocation7 + $0x10] sm:$0xff]
    %v209 = vld [vmem:[#allocation7 + $0x18] sm:$0xff]
    %v210 = vld [vmem:[#allocation7 + $0x20] sm:$0xff]
    %v211 = vld [vmem:[#allocation7 + $0x28] sm:$0xff]
    %v212 = vld [vmem:[#allocation7 + $0x30] sm:$0xff]
    %v213 = vld [vmem:[#allocation7 + $0x38] sm:$0xff]
    %v214 = vld [vmem:[#allocation7 + $0x40] sm:$0xff]
    %v215 = vld [vmem:[#allocation7 + $0x48] sm:$0xff]
    %v216 = vld [vmem:[#allocation7 + $0x50] sm:$0xff]
    %v217 = vld [vmem:[#allocation7 + $0x58] sm:$0xff]
    %v218 = vld [vmem:[#allocation7 + $0x60] sm:$0xff]
    %v219 = vld [vmem:[#allocation7 + $0x68] sm:$0xff]
    %v220 = vld [vmem:[#allocation7 + $0x70] sm:$0xff]
    %v221 = vld [vmem:[#allocation7 + $0x78] sm:$0xff]
    %v222 = vld [vmem:[%s4] sm:$0x1]
    %v224 = vlaneseq
    %v225 = vshrl.u32 %v224, 7
    %v226 = vsub.s32 0, %v225
    %v227 = vrot.slane %v222, %v226
    %229 = vmatprep.subr.mxu0 0.0
    %230 = vmatpush1.msra.mxu0 %v206
    %231 = vmatprep.subr.mxu0 0.0
    %232 = vmatpush1.msra.mxu0 %v207
    %233 = vmatprep.subr.mxu0 0.0
    %234 = vmatpush1.msra.mxu0 %v208
    %235 = vmatprep.subr.mxu0 0.0
    %236 = vmatpush1.msra.mxu0 %v209
    %237 = vmatprep.subr.mxu0 0.0
    %238 = vmatpush1.msra.mxu0 %v210
    %239 = vmatprep.subr.mxu0 0.0
    %240 = vmatpush1.msra.mxu0 %v211
    %241 = vmatprep.subr.mxu0 0.0
    %242 = vmatpush1.msra.mxu0 %v212
    %243 = vmatprep.subr.mxu0 0.0
    %244 = vmatpush1.msra.mxu0 %v213
    %245 = vmatprep.subr.mxu0 0.0
    %246 = vmatpush1.msra.mxu0 %v214
    %247 = vmatprep.subr.mxu0 0.0
    %248 = vmatpush1.msra.mxu0 %v215
    %249 = vmatprep.subr.mxu0 0.0
    %250 = vmatpush1.msra.mxu0 %v216
    %251 = vmatprep.subr.mxu0 0.0
    %252 = vmatpush1.msra.mxu0 %v217
    %253 = vmatprep.subr.mxu0 0.0
    %254 = vmatpush1.msra.mxu0 %v218
    %255 = vmatprep.subr.mxu0 0.0
    %256 = vmatpush1.msra.mxu0 %v219
    %257 = vmatprep.subr.mxu0 0.0
    %258 = vmatpush1.msra.mxu0 %v220
    %259 = vmatprep.subr.mxu0 0.0
    %260 = vmatpush1.msra.mxu0 %v221
    %261 = vmatprep.subr.mxu0 0.0
    %262 = vmatpush1.msra.mxu0 0.0
    %263 = vmatprep.subr.mxu0 0.0
    %264 = vmatpush1.msra.mxu0 0.0
    %265 = vmatprep.subr.mxu0 0.0
    %266 = vmatpush1.msra.mxu0 0.0
    %267 = vmatprep.subr.mxu0 0.0
    %268 = vmatpush1.msra.mxu0 0.0
    %269 = vmatprep.subr.mxu0 0.0
    %270 = vmatpush1.msra.mxu0 0.0
    %271 = vmatprep.subr.mxu0 0.0
    %272 = vmatpush1.msra.mxu0 0.0
    %273 = vmatprep.subr.mxu0 0.0
    %274 = vmatpush1.msra.mxu0 0.0
    %275 = vmatprep.subr.mxu0 0.0
    %276 = vmatpush1.msra.mxu0 0.0
    %277 = vmatprep.subr.mxu0 0.0
    %278 = vmatpush1.msra.mxu0 0.0
    %279 = vmatprep.subr.mxu0 0.0
    %280 = vmatpush1.msra.mxu0 0.0
    %281 = vmatprep.subr.mxu0 0.0
    %282 = vmatpush1.msra.mxu0 0.0
    %283 = vmatprep.subr.mxu0 0.0
    %284 = vmatpush1.msra.mxu0 0.0
    %285 = vmatprep.subr.mxu0 0.0
    %286 = vmatpush1.msra.mxu0 0.0
    %287 = vmatprep.subr.mxu0 0.0
    %288 = vmatpush1.msra.mxu0 0.0
    %289 = vmatprep.subr.mxu0 0.0
    %290 = vmatpush1.msra.mxu0 0.0
    %291 = vmatprep.subr.mxu0 0.0
    %292 = vmatpush1.msra.mxu0 0.0
    %293 = vmatprep.mubr.f32.mxu0 0.0
    %294 = vmatmul.mubr.f32.gmra.mrb[0].mxu0 %v205
    %v295 = vpop.f32.mrb[0].mxu0
    %v296 = vadd.f32 %v227, %v295
    %v297 = vpop.f32.mrb[0].mxu0
    %298 = vdwg.mxu0
    %v299 = vmax.f32 %v296, 0.0
    %v300 = vld [vmem:[#allocation8] sm:$0xff]
    %v301 = vld [vmem:[#allocation8 + $0x8] sm:$0xff]
    %v302 = vld [vmem:[#allocation8 + $0x10] sm:$0xff]
    %v303 = vld [vmem:[#allocation8 + $0x18] sm:$0xff]
    %v304 = vld [vmem:[#allocation8 + $0x20] sm:$0xff]
    %v305 = vld [vmem:[#allocation8 + $0x28] sm:$0xff]
    %v306 = vld [vmem:[#allocation8 + $0x30] sm:$0xff]
    %v307 = vld [vmem:[#allocation8 + $0x38] sm:$0xff]
    %v308 = vld [vmem:[#allocation8 + $0x40] sm:$0xff]
    %v309 = vld [vmem:[#allocation8 + $0x48] sm:$0xff]
    %v310 = vld [vmem:[#allocation8 + $0x50] sm:$0xff]
    %v311 = vld [vmem:[#allocation8 + $0x58] sm:$0xff]
    %v312 = vld [vmem:[#allocation8 + $0x60] sm:$0xff]
    %v313 = vld [vmem:[#allocation8 + $0x68] sm:$0xff]
    %v314 = vld [vmem:[#allocation8 + $0x70] sm:$0xff]
    %v315 = vld [vmem:[#allocation8 + $0x78] sm:$0xff]
    %v316 = vld [vmem:[#allocation8 + $0x80] sm:$0xff]
    %v317 = vld [vmem:[#allocation8 + $0x88] sm:$0xff]
    %v318 = vld [vmem:[#allocation8 + $0x90] sm:$0xff]
    %v319 = vld [vmem:[#allocation8 + $0x98] sm:$0xff]
    %v320 = vld [vmem:[#allocation8 + $0xa0] sm:$0xff]
    %v321 = vld [vmem:[#allocation8 + $0xa8] sm:$0xff]
    %v322 = vld [vmem:[#allocation8 + $0xb0] sm:$0xff]
    %v323 = vld [vmem:[#allocation8 + $0xb8] sm:$0xff]
    %v324 = vld [vmem:[#allocation8 + $0xc0] sm:$0xff]
    %v325 = vld [vmem:[#allocation8 + $0xc8] sm:$0xff]
    %v326 = vld [vmem:[#allocation8 + $0xd0] sm:$0xff]
    %v327 = vld [vmem:[#allocation8 + $0xd8] sm:$0xff]
    %v328 = vld [vmem:[#allocation8 + $0xe0] sm:$0xff]
    %v329 = vld [vmem:[#allocation8 + $0xe8] sm:$0xff]
    %v330 = vld [vmem:[#allocation8 + $0xf0] sm:$0xff]
    %v331 = vld [vmem:[#allocation8 + $0xf8] sm:$0xff]
    %v332 = vld [vmem:[%s6] sm:$0x3]
    %v334 = vlaneseq
    %v335 = vshrl.u32 %v334, 7
    %v336 = vsub.s32 0, %v335
    %v337 = vrot.slane %v332, %v336
    %v338 = vlaneseq
    %v339 = vshrl.u32 %v338, 7
    %v340 = vsub.s32 1, %v339
    %v341 = vrot.slane %v332, %v340
    %344 = vmatprep.subr.mxu0 %v301
    %345 = vmatpush1.msra.mxu0 %v300
    %346 = vmatprep.subr.mxu0 %v303
    %347 = vmatpush1.msra.mxu0 %v302
    %348 = vmatprep.subr.mxu0 %v305
    %349 = vmatpush1.msra.mxu0 %v304
    %350 = vmatprep.subr.mxu0 %v307
    %351 = vmatpush1.msra.mxu0 %v306
    %352 = vmatprep.subr.mxu0 %v309
    %353 = vmatpush1.msra.mxu0 %v308
    %354 = vmatprep.subr.mxu0 %v311
    %355 = vmatpush1.msra.mxu0 %v310
    %356 = vmatprep.subr.mxu0 %v313
    %357 = vmatpush1.msra.mxu0 %v312
    %358 = vmatprep.subr.mxu0 %v315
    %359 = vmatpush1.msra.mxu0 %v314
    %360 = vmatprep.subr.mxu0 %v317
    %361 = vmatpush1.msra.mxu0 %v316
    %362 = vmatprep.subr.mxu0 %v319
    %363 = vmatpush1.msra.mxu0 %v318
    %364 = vmatprep.subr.mxu0 %v321
    %365 = vmatpush1.msra.mxu0 %v320
    %366 = vmatprep.subr.mxu0 %v323
    %367 = vmatpush1.msra.mxu0 %v322
    %368 = vmatprep.subr.mxu0 %v325
    %369 = vmatpush1.msra.mxu0 %v324
    %370 = vmatprep.subr.mxu0 %v327
    %371 = vmatpush1.msra.mxu0 %v326
    %372 = vmatprep.subr.mxu0 %v329
    %373 = vmatpush1.msra.mxu0 %v328
    %374 = vmatprep.subr.mxu0 %v331
    %375 = vmatpush1.msra.mxu0 %v330
    %376 = vmatprep.subr.mxu0 0.0
    %377 = vmatpush1.msra.mxu0 0.0
    %378 = vmatprep.subr.mxu0 0.0
    %379 = vmatpush1.msra.mxu0 0.0
    %380 = vmatprep.subr.mxu0 0.0
    %381 = vmatpush1.msra.mxu0 0.0
    %382 = vmatprep.subr.mxu0 0.0
    %383 = vmatpush1.msra.mxu0 0.0
    %384 = vmatprep.subr.mxu0 0.0
    %385 = vmatpush1.msra.mxu0 0.0
    %386 = vmatprep.subr.mxu0 0.0
    %387 = vmatpush1.msra.mxu0 0.0
    %388 = vmatprep.subr.mxu0 0.0
    %389 = vmatpush1.msra.mxu0 0.0
    %390 = vmatprep.subr.mxu0 0.0
    %391 = vmatpush1.msra.mxu0 0.0
    %392 = vmatprep.subr.mxu0 0.0
    %393 = vmatpush1.msra.mxu0 0.0
    %394 = vmatprep.subr.mxu0 0.0
    %395 = vmatpush1.msra.mxu0 0.0
    %396 = vmatprep.subr.mxu0 0.0
    %397 = vmatpush1.msra.mxu0 0.0
    %398 = vmatprep.subr.mxu0 0.0
    %399 = vmatpush1.msra.mxu0 0.0
    %400 = vmatprep.subr.mxu0 0.0
    %401 = vmatpush1.msra.mxu0 0.0
    %402 = vmatprep.subr.mxu0 0.0
    %403 = vmatpush1.msra.mxu0 0.0
    %404 = vmatprep.subr.mxu0 0.0
    %405 = vmatpush1.msra.mxu0 0.0
    %406 = vmatprep.subr.mxu0 0.0
    %407 = vmatpush1.msra.mxu0 0.0
    %408 = vmatprep.mubr.f32.mxu0 0.0
    %409 = vmatmul.mubr.f32.gmra.mrb[0].mxu0 %v299
    %v410 = vpop.f32.mrb[0].mxu0
    %v411 = vadd.f32 %v337, %v410
    %v412 = vpop.f32.mrb[0].mxu0
    %v413 = vadd.f32 %v341, %v412
    %414 = vdwg.mxu0
    %v415 = vmax.f32 %v411, 0.0
    %v416 = vmax.f32 %v413, 0.0
    %v417 = vld [vmem:[#allocation10] sm:$0xff]
    %v418 = vld [vmem:[#allocation10 + $0x8] sm:$0xff]
    %v419 = vld [vmem:[#allocation10 + $0x10] sm:$0xff]
    %v420 = vld [vmem:[#allocation10 + $0x18] sm:$0xff]
    %v421 = vld [vmem:[#allocation10 + $0x20] sm:$0xff]
    %v422 = vld [vmem:[#allocation10 + $0x28] sm:$0xff]
    %v423 = vld [vmem:[#allocation10 + $0x30] sm:$0xff]
    %v424 = vld [vmem:[#allocation10 + $0x38] sm:$0xff]
    %v425 = vld [vmem:[#allocation10 + $0x40] sm:$0xff]
    %v426 = vld [vmem:[#allocation10 + $0x48] sm:$0xff]
    %v427 = vld [vmem:[#allocation10 + $0x50] sm:$0xff]
    %v428 = vld [vmem:[#allocation10 + $0x58] sm:$0xff]
    %v429 = vld [vmem:[#allocation10 + $0x60] sm:$0xff]
    %v430 = vld [vmem:[#allocation10 + $0x68] sm:$0xff]
    %v431 = vld [vmem:[#allocation10 + $0x70] sm:$0xff]
    %v432 = vld [vmem:[#allocation10 + $0x78] sm:$0xff]
    %v433 = vld [vmem:[#allocation10 + $0x80] sm:$0xff]
    %v434 = vld [vmem:[#allocation10 + $0x88] sm:$0xff]
    %v435 = vld [vmem:[#allocation10 + $0x90] sm:$0xff]
    %v436 = vld [vmem:[#allocation10 + $0x98] sm:$0xff]
    %v437 = vld [vmem:[#allocation10 + $0xa0] sm:$0xff]
    %v438 = vld [vmem:[#allocation10 + $0xa8] sm:$0xff]
    %v439 = vld [vmem:[#allocation10 + $0xb0] sm:$0xff]
    %v440 = vld [vmem:[#allocation10 + $0xb8] sm:$0xff]
    %v441 = vld [vmem:[#allocation10 + $0xc0] sm:$0xff]
    %v442 = vld [vmem:[#allocation10 + $0xc8] sm:$0xff]
    %v443 = vld [vmem:[#allocation10 + $0xd0] sm:$0xff]
    %v444 = vld [vmem:[#allocation10 + $0xd8] sm:$0xff]
    %v445 = vld [vmem:[#allocation10 + $0xe0] sm:$0xff]
    %v446 = vld [vmem:[#allocation10 + $0xe8] sm:$0xff]
    %v447 = vld [vmem:[#allocation10 + $0xf0] sm:$0xff]
    %v448 = vld [vmem:[#allocation10 + $0xf8] sm:$0xff]
    %v449 = vld [vmem:[%s8] sm:$0x1]
    %v451 = vlaneseq
    %v452 = vshrl.u32 %v451, 7
    %v453 = vsub.s32 0, %v452
    %v454 = vrot.slane %v449, %v453
    %456 = vmatprep.subr.mxu0 0.0
    %457 = vmatpush1.msra.mxu0 %v417
    %458 = vmatprep.subr.mxu0 0.0
    %459 = vmatpush1.msra.mxu0 %v418
    %460 = vmatprep.subr.mxu0 0.0
    %461 = vmatpush1.msra.mxu0 %v419
    %462 = vmatprep.subr.mxu0 0.0
    %463 = vmatpush1.msra.mxu0 %v420
    %464 = vmatprep.subr.mxu0 0.0
    %465 = vmatpush1.msra.mxu0 %v421
    %466 = vmatprep.subr.mxu0 0.0
    %467 = vmatpush1.msra.mxu0 %v422
    %468 = vmatprep.subr.mxu0 0.0
    %469 = vmatpush1.msra.mxu0 %v423
    %470 = vmatprep.subr.mxu0 0.0
    %471 = vmatpush1.msra.mxu0 %v424
    %472 = vmatprep.subr.mxu0 0.0
    %473 = vmatpush1.msra.mxu0 %v425
    %474 = vmatprep.subr.mxu0 0.0
    %475 = vmatpush1.msra.mxu0 %v426
    %476 = vmatprep.subr.mxu0 0.0
    %477 = vmatpush1.msra.mxu0 %v427
    %478 = vmatprep.subr.mxu0 0.0
    %479 = vmatpush1.msra.mxu0 %v428
    %480 = vmatprep.subr.mxu0 0.0
    %481 = vmatpush1.msra.mxu0 %v429
    %482 = vmatprep.subr.mxu0 0.0
    %483 = vmatpush1.msra.mxu0 %v430
    %484 = vmatprep.subr.mxu0 0.0
    %485 = vmatpush1.msra.mxu0 %v431
    %486 = vmatprep.subr.mxu0 0.0
    %487 = vmatpush1.msra.mxu0 %v432
    %488 = vmatprep.subr.mxu0 0.0
    %489 = vmatpush1.msra.mxu0 %v433
    %490 = vmatprep.subr.mxu0 0.0
    %491 = vmatpush1.msra.mxu0 %v434
    %492 = vmatprep.subr.mxu0 0.0
    %493 = vmatpush1.msra.mxu0 %v435
    %494 = vmatprep.subr.mxu0 0.0
    %495 = vmatpush1.msra.mxu0 %v436
    %496 = vmatprep.subr.mxu0 0.0
    %497 = vmatpush1.msra.mxu0 %v437
    %498 = vmatprep.subr.mxu0 0.0
    %499 = vmatpush1.msra.mxu0 %v438
    %500 = vmatprep.subr.mxu0 0.0
    %501 = vmatpush1.msra.mxu0 %v439
    %502 = vmatprep.subr.mxu0 0.0
    %503 = vmatpush1.msra.mxu0 %v440
    %504 = vmatprep.subr.mxu0 0.0
    %505 = vmatpush1.msra.mxu0 %v441
    %506 = vmatprep.subr.mxu0 0.0
    %507 = vmatpush1.msra.mxu0 %v442
    %508 = vmatprep.subr.mxu0 0.0
    %509 = vmatpush1.msra.mxu0 %v443
    %510 = vmatprep.subr.mxu0 0.0
    %511 = vmatpush1.msra.mxu0 %v444
    %512 = vmatprep.subr.mxu0 0.0
    %513 = vmatpush1.msra.mxu0 %v445
    %514 = vmatprep.subr.mxu0 0.0
    %515 = vmatpush1.msra.mxu0 %v446
    %516 = vmatprep.subr.mxu0 0.0
    %517 = vmatpush1.msra.mxu0 %v447
    %518 = vmatprep.subr.mxu0 0.0
    %519 = vmatpush1.msra.mxu0 %v448
    %520 = vmatprep.mubr.f32.mxu0 %v416
    %521 = vmatmul.mubr.f32.gmra.mrb[0].mxu0 %v415
    %v522 = vpop.f32.mrb[0].mxu0
    %v523 = vadd.f32 %v454, %v522
    %v524 = vpop.f32.mrb[0].mxu0
    %525 = vdwg.mxu0
    %v526 = vmax.f32 %v523, 0.0
    %v527 = vld [vmem:[#allocation11] sm:$0xff]
    %v528 = vld [vmem:[#allocation11 + $0x8] sm:$0xff]
    %v529 = vld [vmem:[#allocation11 + $0x10] sm:$0xff]
    %v530 = vld [vmem:[#allocation11 + $0x18] sm:$0xff]
    %v531 = vld [vmem:[#allocation11 + $0x20] sm:$0xff]
    %v532 = vld [vmem:[#allocation11 + $0x28] sm:$0xff]
    %v533 = vld [vmem:[#allocation11 + $0x30] sm:$0xff]
    %v534 = vld [vmem:[#allocation11 + $0x38] sm:$0xff]
    %v535 = vld [vmem:[#allocation11 + $0x40] sm:$0xff]
    %v536 = vld [vmem:[#allocation11 + $0x48] sm:$0xff]
    %v537 = vld [vmem:[#allocation11 + $0x50] sm:$0xff]
    %v538 = vld [vmem:[#allocation11 + $0x58] sm:$0xff]
    %v539 = vld [vmem:[#allocation11 + $0x60] sm:$0xff]
    %v540 = vld [vmem:[#allocation11 + $0x68] sm:$0xff]
    %v541 = vld [vmem:[#allocation11 + $0x70] sm:$0xff]
    %v542 = vld [vmem:[#allocation11 + $0x78] sm:$0xff]
    %v543 = vld [vmem:[%s10] sm:$0x1]
    %v545 = vlaneseq
    %v546 = vshrl.u32 %v545, 7
    %v547 = vsub.s32 0, %v546
    %v548 = vrot.slane %v543, %v547
    %550 = vmatprep.subr.mxu0 0.0
    %551 = vmatpush1.msra.mxu0 %v527
    %552 = vmatprep.subr.mxu0 0.0
    %553 = vmatpush1.msra.mxu0 %v528
    %554 = vmatprep.subr.mxu0 0.0
    %555 = vmatpush1.msra.mxu0 %v529
    %556 = vmatprep.subr.mxu0 0.0
    %557 = vmatpush1.msra.mxu0 %v530
    %558 = vmatprep.subr.mxu0 0.0
    %559 = vmatpush1.msra.mxu0 %v531
    %560 = vmatprep.subr.mxu0 0.0
    %561 = vmatpush1.msra.mxu0 %v532
    %562 = vmatprep.subr.mxu0 0.0
    %563 = vmatpush1.msra.mxu0 %v533
    %564 = vmatprep.subr.mxu0 0.0
    %565 = vmatpush1.msra.mxu0 %v534
    %566 = vmatprep.subr.mxu0 0.0
    %567 = vmatpush1.msra.mxu0 %v535
    %568 = vmatprep.subr.mxu0 0.0
    %569 = vmatpush1.msra.mxu0 %v536
    %570 = vmatprep.subr.mxu0 0.0
    %571 = vmatpush1.msra.mxu0 %v537
    %572 = vmatprep.subr.mxu0 0.0
    %573 = vmatpush1.msra.mxu0 %v538
    %574 = vmatprep.subr.mxu0 0.0
    %575 = vmatpush1.msra.mxu0 %v539
    %576 = vmatprep.subr.mxu0 0.0
    %577 = vmatpush1.msra.mxu0 %v540
    %578 = vmatprep.subr.mxu0 0.0
    %579 = vmatpush1.msra.mxu0 %v541
    %580 = vmatprep.subr.mxu0 0.0
    %581 = vmatpush1.msra.mxu0 %v542
    %582 = vmatprep.subr.mxu0 0.0
    %583 = vmatpush1.msra.mxu0 0.0
    %584 = vmatprep.subr.mxu0 0.0
    %585 = vmatpush1.msra.mxu0 0.0
    %586 = vmatprep.subr.mxu0 0.0
    %587 = vmatpush1.msra.mxu0 0.0
    %588 = vmatprep.subr.mxu0 0.0
    %589 = vmatpush1.msra.mxu0 0.0
    %590 = vmatprep.subr.mxu0 0.0
    %591 = vmatpush1.msra.mxu0 0.0
    %592 = vmatprep.subr.mxu0 0.0
    %593 = vmatpush1.msra.mxu0 0.0
    %594 = vmatprep.subr.mxu0 0.0
    %595 = vmatpush1.msra.mxu0 0.0
    %596 = vmatprep.subr.mxu0 0.0
    %597 = vmatpush1.msra.mxu0 0.0
    %598 = vmatprep.subr.mxu0 0.0
    %599 = vmatpush1.msra.mxu0 0.0
    %600 = vmatprep.subr.mxu0 0.0
    %601 = vmatpush1.msra.mxu0 0.0
    %602 = vmatprep.subr.mxu0 0.0
    %603 = vmatpush1.msra.mxu0 0.0
    %604 = vmatprep.subr.mxu0 0.0
    %605 = vmatpush1.msra.mxu0 0.0
    %606 = vmatprep.subr.mxu0 0.0
    %607 = vmatpush1.msra.mxu0 0.0
    %608 = vmatprep.subr.mxu0 0.0
    %609 = vmatpush1.msra.mxu0 0.0
    %610 = vmatprep.subr.mxu0 0.0
    %611 = vmatpush1.msra.mxu0 0.0
    %612 = vmatprep.subr.mxu0 0.0
    %613 = vmatpush1.msra.mxu0 0.0
    %614 = vmatprep.mubr.f32.mxu0 0.0
    %615 = vmatmul.mubr.f32.gmra.mrb[0].mxu0 %v526
    %v616 = vpop.f32.mrb[0].mxu0
    %v617 = vadd.f32 %v548, %v616
    %v618 = vpop.f32.mrb[0].mxu0
    %619 = vdwg.mxu0
    %620 = vst [vmem:[#allocation13] sm:$0xff] %v617
    // Predicated region
    $region70: #{tpu_custom_call.1} parent=1 // pred_check
      _
    $region71: #{tpu_custom_call.1} parent=1 // pred_check_branch
      %622 = sbr.rel (0) target = $region73
    $region72: #{tpu_custom_call.1} parent=1 // pred_region
      %s624 = ssub.s32 128, 128
      %625 = vsyncadd [#allocation4], %s624
      %s627 = sshll.u32 [#allocation13], 4
      %s628 = int_to_ptr.vmem [resolvable:$true] %s627
      %630 = dma.vmem_to_hbm [thread:$0]  %s628, 128, %s11, [#allocation4]
    $region73: #{tpu_custom_call.1} parent=1 // pred_fallthru
      _
    // Predicated region
    $region74: #{tpu_custom_call.1} parent=1 // pred_check
      _
    $region75: #{tpu_custom_call.1} parent=1 // pred_check_branch
      %632 = sbr.rel (0) target = $region77
    $region76: #{tpu_custom_call.1} parent=1 // pred_region
      %633 = dma.done [#allocation4], 128
    $region77: #{tpu_custom_call.1} parent=1 // pred_fallthru
      _
    %634 = vsyncpa [#allocation3], 1
    %635 = vsyncpa [#allocation6], 1
    %636 = vsyncpa [#allocation9], 1
    %637 = vsyncpa [#allocation12], 1
    %638 = vsyncpa [#allocation4], 1

</llo_original>
